<compile_context>
chip_gen: v6e
topology: v6e:2x2x1
jax: 0.10.0
libtpu: 0.0.40
codegen_flags: <defaults>
</compile_context>

<pallas_src>
import jax
import jax.numpy as jnp
from jax.experimental import pallas as pl
from jax.experimental.pallas import tpu as pltpu


def _cdiv(a, b):
    return -(-a // b)


def _make_wlp_kernel(K):
    """One grid step == one row tile; all K layers combined in one shot.

    Kernel args (scalar-prefetch first):
      w_ref            : SMEM (K,) float32  -- pre-normalized layer weights
      x_ref_0..K-1     : VMEM (TM, C)       -- layer row tiles (any dtype)
      o_ref            : VMEM (TM, C) f32   -- output tile, written once
    """

    def kernel(w_ref, *refs):
        x_refs, o_ref = refs[:K], refs[K]
        acc = w_ref[0] * x_refs[0][...].astype(jnp.float32)
        for j in range(1, K):                      # static unroll over layers
            acc = acc + w_ref[j] * x_refs[j][...].astype(jnp.float32)
        o_ref[...] = acc                           # single write, no RMW
    return kernel


def _flat_layout(total):
    """Lane-dense (R, C) factorization of `total` (pad to 128 if needed)."""
    padded = _cdiv(total, 128) * 128
    C = 128
    while C * 2 <= 1024 and padded % (C * 2) == 0:
        C *= 2
    return padded // C, C, padded - total


def _vmem_capacity_bytes():
    """Per-TensorCore VMEM capacity (64 MiB v7x, 128 MiB v5e/v6e)."""
    try:
        info = pltpu.get_tpu_info()
        cap = getattr(info, "vmem_capacity_bytes", None)
        if cap:
            return int(cap)
    except Exception:
        pass
    return 64 * 1024 * 1024            # conservative fallback (v7x size)


def weighted_layer_pooling(features, layer_weights, layer_start=4):
    """JAX/Pallas equivalent of WeightedLayerPooling.forward."""
    x = features["all_layer_embeddings"]

    if isinstance(x, (list, tuple)):
        # List path: NO jnp.stack -- pass the K relevant layers directly.
        layers = list(x[layer_start:])
        K = len(layers)
        B, S, H = layers[0].shape
        in_dtype = jnp.dtype(layers[0].dtype)
        stacked = None
    else:
        stacked = x
        Lp1, B, S, H = x.shape
        K = Lp1 - layer_start
        in_dtype = jnp.dtype(x.dtype)
        layers = None

    assert layer_weights.shape == (K,)

    # Pre-normalize weights -> removes the final in-kernel division pass.
    w = layer_weights.astype(jnp.float32)
    w = w / jnp.sum(w)

    # Lane-dense flattening of the trailing dims (contiguous reshape = free).
    total = B * S * H
    R, C, pad = _flat_layout(total)

    # ---- operands + BlockSpecs (both paths feed the same kernel) -----------
    if layers is not None:
        if pad:
            # TODO(synk): rare non-128-aligned case -> one-time pad copy/layer.
            ops = [jnp.pad(l.reshape(total), (0, pad)).reshape(R, C)
                   for l in layers]
        else:
            ops = [l.reshape(R, C) for l in layers]          # free reshapes

        def make_in_spec(j, tm):
            return pl.BlockSpec((tm, C), lambda r, w_ref: (r, 0))
    else:
        if pad:
            # TODO(synk): rare non-128-aligned case -> one-time pad copy.
            xk = jnp.pad(stacked[layer_start:].reshape(K, total),
                         ((0, 0), (0, pad))).reshape(K, R, C)
            off = 0
        else:
            xk = stacked.reshape(Lp1, R, C)                  # free reshape
            off = layer_start
        ops = [xk] * K                                       # aliased, no copy

        def make_in_spec(j, tm):
            return pl.BlockSpec(
                (pl.Squeezed(), tm, C),
                lambda r, w_ref, j=j: (off + j, r, 0),
            )

    # ---- per-generation tile sizing ----------------------------------------
    in_bytes = in_dtype.itemsize
    align = max(8, 32 // in_bytes)               # 8 (f32) / 16 (bf16) / 32 (i8)

    vmem_cap = _vmem_capacity_bytes()
    budget = int(vmem_cap * 0.6)                 # pipelined-buffer budget
    per_row = C * (K * in_bytes + 4)             # K input tiles + f32 output
    max_tm = max(1, budget // (2 * per_row))     # 2x = double buffering

    if R <= align:
        tm = R                                   # tiny row axis: full-dim block
    else:
        tm = max(align, (min(max_tm, R) // align) * align)
        # Ensure >= 2 row tiles so both v7x TensorCores get work.
        tm = min(tm, _cdiv(_cdiv(R, 2), align) * align)
    n_rows = _cdiv(R, tm)

    vmem_limit = int(vmem_cap * 0.9)             # well above 2*tm*per_row

    out = pl.pallas_call(
        _make_wlp_kernel(K),
        out_shape=jax.ShapeDtypeStruct((R, C), jnp.float32),
        grid_spec=pltpu.PrefetchScalarGridSpec(
            num_scalar_prefetch=1,                       # normalized weights
            grid=(n_rows,),                              # rows only; no K axis
            in_specs=[make_in_spec(j, tm) for j in range(K)],
            out_specs=pl.BlockSpec((tm, C), lambda r, w_ref: (r, 0)),
        ),
        compiler_params=pltpu.CompilerParams(
            dimension_semantics=("parallel",),           # megacore-shardable
            vmem_limit_bytes=vmem_limit,
        ),
    )(w, *ops)

    if pad:
        out = out.reshape(-1)[:total]
    token_embeddings = out.reshape(B, S, H)

    new_features = dict(features)
    new_features["token_embeddings"] = token_embeddings
    return new_features


if __name__ == "__main__":
    # Deterministic synthetic setup matching the module's __init__:
    num_hidden_layers = 12
    layer_start = 4
    K = num_hidden_layers + 1 - layer_start          # 9 pooled layers

    B, S, H = 2, 8, 32
    key = jax.random.PRNGKey(0)
    keys = jax.random.split(key, num_hidden_layers + 1)
    layers_f32 = [
        jax.random.normal(keys[i], (B, S, H), dtype=jnp.float32)
        for i in range(num_hidden_layers + 1)
    ]
    # nn.Parameter(torch.tensor([1]*K, dtype=torch.float)) -> ones
    layer_weights = jnp.ones((K,), dtype=jnp.float32)

    # Pure-JAX reference.
    xs = jnp.stack(layers_f32)[layer_start:]
    ref = (layer_weights[:, None, None, None] * xs).sum(0) / layer_weights.sum()

    # 1) list input (sentence-transformers case): zero-copy, no jnp.stack.
    out1 = weighted_layer_pooling(
        {"all_layer_embeddings": layers_f32}, layer_weights, layer_start
    )["token_embeddings"]
    out1 = jax.block_until_ready(out1)
    assert out1.shape == (B, S, H) and out1.dtype == jnp.float32
    assert jnp.allclose(out1, ref, atol=1e-5, rtol=1e-5)

    # 2) pre-stacked (L+1, B, S, H) input: aliased operands, no slice copy.
    stacked = jnp.stack(layers_f32)
    out2 = jax.block_until_ready(
        weighted_layer_pooling(
            {"all_layer_embeddings": stacked}, layer_weights, layer_start
        )["token_embeddings"]
    )
    assert jnp.allclose(out2, ref, atol=1e-5, rtol=1e-5)

    # 3) bf16 hidden states (recommended deployment dtype), f32 accumulation.
    layers_bf16 = [l.astype(jnp.bfloat16) for l in layers_f32]
    xs_bf16 = jnp.stack(layers_bf16).astype(jnp.float32)[layer_start:]
    ref_bf16 = (layer_weights[:, None, None, None] * xs_bf16).sum(0) / layer_weights.sum()
    out3 = jax.block_until_ready(
        weighted_layer_pooling(
            {"all_layer_embeddings": layers_bf16}, layer_weights, layer_start
        )["token_embeddings"]
    )
    assert jnp.allclose(out3, ref_bf16, atol=1e-3, rtol=1e-3)

    print("KERNEL_OK")
</pallas_src>

<mosaic_0001>
module attributes {stable_mosaic.version = 11 : i64} {
  func.func @kernel(%arg0: i32, %arg1: memref<9xf32, #tpu.memory_space<smem>>, %arg2: memref<1x512xf32, #tpu.memory_space<vmem>>, %arg3: memref<1x512xf32, #tpu.memory_space<vmem>>, %arg4: memref<1x512xf32, #tpu.memory_space<vmem>>, %arg5: memref<1x512xf32, #tpu.memory_space<vmem>>, %arg6: memref<1x512xf32, #tpu.memory_space<vmem>>, %arg7: memref<1x512xf32, #tpu.memory_space<vmem>>, %arg8: memref<1x512xf32, #tpu.memory_space<vmem>>, %arg9: memref<1x512xf32, #tpu.memory_space<vmem>>, %arg10: memref<1x512xf32, #tpu.memory_space<vmem>>, %arg11: memref<1x512xf32, #tpu.memory_space<vmem>>) attributes {dimension_semantics = [#tpu.dimension_semantics<parallel>], iteration_bounds = array<i64: 1>, scalar_prefetch = 1 : i64, scratch_operands = 0 : i64, tpu.core_type = #tpu.core_type<tc>, window_params = [{transform_indices = @transform_0, window_bounds = array<i64: 1, 512>}, {transform_indices = @transform_1, window_bounds = array<i64: 1, 512>}, {transform_indices = @transform_2, window_bounds = array<i64: 1, 512>}, {transform_indices = @transform_3, window_bounds = array<i64: 1, 512>}, {transform_indices = @transform_4, window_bounds = array<i64: 1, 512>}, {transform_indices = @transform_5, window_bounds = array<i64: 1, 512>}, {transform_indices = @transform_6, window_bounds = array<i64: 1, 512>}, {transform_indices = @transform_7, window_bounds = array<i64: 1, 512>}, {transform_indices = @transform_8, window_bounds = array<i64: 1, 512>}, {transform_indices = @transform_9, window_bounds = array<i64: 1, 512>}]} {
    %c0 = arith.constant 0 : index
    %0 = memref.load %arg1[%c0] : memref<9xf32, #tpu.memory_space<smem>>
    %c0_0 = arith.constant 0 : index
    %c0_1 = arith.constant 0 : index
    %1 = vector.load %arg2[%c0_0, %c0_1] : memref<1x512xf32, #tpu.memory_space<vmem>>, vector<1x512xf32>
    %2 = vector.broadcast %0 : f32 to vector<1x512xf32>
    %3 = arith.mulf %2, %1 : vector<1x512xf32>
    %c1 = arith.constant 1 : index
    %4 = memref.load %arg1[%c1] : memref<9xf32, #tpu.memory_space<smem>>
    %c0_2 = arith.constant 0 : index
    %c0_3 = arith.constant 0 : index
    %5 = vector.load %arg3[%c0_2, %c0_3] : memref<1x512xf32, #tpu.memory_space<vmem>>, vector<1x512xf32>
    %6 = vector.broadcast %4 : f32 to vector<1x512xf32>
    %7 = arith.mulf %6, %5 : vector<1x512xf32>
    %8 = arith.addf %3, %7 : vector<1x512xf32>
    %c2 = arith.constant 2 : index
    %9 = memref.load %arg1[%c2] : memref<9xf32, #tpu.memory_space<smem>>
    %c0_4 = arith.constant 0 : index
    %c0_5 = arith.constant 0 : index
    %10 = vector.load %arg4[%c0_4, %c0_5] : memref<1x512xf32, #tpu.memory_space<vmem>>, vector<1x512xf32>
    %11 = vector.broadcast %9 : f32 to vector<1x512xf32>
    %12 = arith.mulf %11, %10 : vector<1x512xf32>
    %13 = arith.addf %8, %12 : vector<1x512xf32>
    %c3 = arith.constant 3 : index
    %14 = memref.load %arg1[%c3] : memref<9xf32, #tpu.memory_space<smem>>
    %c0_6 = arith.constant 0 : index
    %c0_7 = arith.constant 0 : index
    %15 = vector.load %arg5[%c0_6, %c0_7] : memref<1x512xf32, #tpu.memory_space<vmem>>, vector<1x512xf32>
    %16 = vector.broadcast %14 : f32 to vector<1x512xf32>
    %17 = arith.mulf %16, %15 : vector<1x512xf32>
    %18 = arith.addf %13, %17 : vector<1x512xf32>
    %c4 = arith.constant 4 : index
    %19 = memref.load %arg1[%c4] : memref<9xf32, #tpu.memory_space<smem>>
    %c0_8 = arith.constant 0 : index
    %c0_9 = arith.constant 0 : index
    %20 = vector.load %arg6[%c0_8, %c0_9] : memref<1x512xf32, #tpu.memory_space<vmem>>, vector<1x512xf32>
    %21 = vector.broadcast %19 : f32 to vector<1x512xf32>
    %22 = arith.mulf %21, %20 : vector<1x512xf32>
    %23 = arith.addf %18, %22 : vector<1x512xf32>
    %c5 = arith.constant 5 : index
    %24 = memref.load %arg1[%c5] : memref<9xf32, #tpu.memory_space<smem>>
    %c0_10 = arith.constant 0 : index
    %c0_11 = arith.constant 0 : index
    %25 = vector.load %arg7[%c0_10, %c0_11] : memref<1x512xf32, #tpu.memory_space<vmem>>, vector<1x512xf32>
    %26 = vector.broadcast %24 : f32 to vector<1x512xf32>
    %27 = arith.mulf %26, %25 : vector<1x512xf32>
    %28 = arith.addf %23, %27 : vector<1x512xf32>
    %c6 = arith.constant 6 : index
    %29 = memref.load %arg1[%c6] : memref<9xf32, #tpu.memory_space<smem>>
    %c0_12 = arith.constant 0 : index
    %c0_13 = arith.constant 0 : index
    %30 = vector.load %arg8[%c0_12, %c0_13] : memref<1x512xf32, #tpu.memory_space<vmem>>, vector<1x512xf32>
    %31 = vector.broadcast %29 : f32 to vector<1x512xf32>
    %32 = arith.mulf %31, %30 : vector<1x512xf32>
    %33 = arith.addf %28, %32 : vector<1x512xf32>
    %c7 = arith.constant 7 : index
    %34 = memref.load %arg1[%c7] : memref<9xf32, #tpu.memory_space<smem>>
    %c0_14 = arith.constant 0 : index
    %c0_15 = arith.constant 0 : index
    %35 = vector.load %arg9[%c0_14, %c0_15] : memref<1x512xf32, #tpu.memory_space<vmem>>, vector<1x512xf32>
    %36 = vector.broadcast %34 : f32 to vector<1x512xf32>
    %37 = arith.mulf %36, %35 : vector<1x512xf32>
    %38 = arith.addf %33, %37 : vector<1x512xf32>
    %c8 = arith.constant 8 : index
    %39 = memref.load %arg1[%c8] : memref<9xf32, #tpu.memory_space<smem>>
    %c0_16 = arith.constant 0 : index
    %c0_17 = arith.constant 0 : index
    %40 = vector.load %arg10[%c0_16, %c0_17] : memref<1x512xf32, #tpu.memory_space<vmem>>, vector<1x512xf32>
    %41 = vector.broadcast %39 : f32 to vector<1x512xf32>
    %42 = arith.mulf %41, %40 : vector<1x512xf32>
    %43 = arith.addf %38, %42 : vector<1x512xf32>
    %c0_18 = arith.constant 0 : index
    %c0_19 = arith.constant 0 : index
    %44 = vector.load %arg11[%c0_18, %c0_19] : memref<1x512xf32, #tpu.memory_space<vmem>>, vector<1x512xf32>
    tpu.vector_store %arg11[%c0_18, %c0_19], %43 {strides = array<i32>} : memref<1x512xf32, #tpu.memory_space<vmem>>, vector<1x512xf32>,
    return
  }
  func.func @transform_0(%arg0: i32, %arg1: memref<9xf32, #tpu.memory_space<smem>>) -> (i32, i32) {
    %c0_i32 = arith.constant 0 : i32
    %c0_i32_0 = arith.constant 0 : i32
    return %arg0, %c0_i32 : i32, i32
  }
  func.func @transform_1(%arg0: i32, %arg1: memref<9xf32, #tpu.memory_space<smem>>) -> (i32, i32) {
    %c0_i32 = arith.constant 0 : i32
    %c0_i32_0 = arith.constant 0 : i32
    return %arg0, %c0_i32 : i32, i32
  }
  func.func @transform_2(%arg0: i32, %arg1: memref<9xf32, #tpu.memory_space<smem>>) -> (i32, i32) {
    %c0_i32 = arith.constant 0 : i32
    %c0_i32_0 = arith.constant 0 : i32
    return %arg0, %c0_i32 : i32, i32
  }
  func.func @transform_3(%arg0: i32, %arg1: memref<9xf32, #tpu.memory_space<smem>>) -> (i32, i32) {
    %c0_i32 = arith.constant 0 : i32
    %c0_i32_0 = arith.constant 0 : i32
    return %arg0, %c0_i32 : i32, i32
  }
  func.func @transform_4(%arg0: i32, %arg1: memref<9xf32, #tpu.memory_space<smem>>) -> (i32, i32) {
    %c0_i32 = arith.constant 0 : i32
    %c0_i32_0 = arith.constant 0 : i32
    return %arg0, %c0_i32 : i32, i32
  }
  func.func @transform_5(%arg0: i32, %arg1: memref<9xf32, #tpu.memory_space<smem>>) -> (i32, i32) {
    %c0_i32 = arith.constant 0 : i32
    %c0_i32_0 = arith.constant 0 : i32
    return %arg0, %c0_i32 : i32, i32
  }
  func.func @transform_6(%arg0: i32, %arg1: memref<9xf32, #tpu.memory_space<smem>>) -> (i32, i32) {
    %c0_i32 = arith.constant 0 : i32
    %c0_i32_0 = arith.constant 0 : i32
    return %arg0, %c0_i32 : i32, i32
  }
  func.func @transform_7(%arg0: i32, %arg1: memref<9xf32, #tpu.memory_space<smem>>) -> (i32, i32) {
    %c0_i32 = arith.constant 0 : i32
    %c0_i32_0 = arith.constant 0 : i32
    return %arg0, %c0_i32 : i32, i32
  }
  func.func @transform_8(%arg0: i32, %arg1: memref<9xf32, #tpu.memory_space<smem>>) -> (i32, i32) {
    %c0_i32 = arith.constant 0 : i32
    %c0_i32_0 = arith.constant 0 : i32
    return %arg0, %c0_i32 : i32, i32
  }
  func.func @transform_9(%arg0: i32, %arg1: memref<9xf32, #tpu.memory_space<smem>>) -> (i32, i32) {
    %c0_i32 = arith.constant 0 : i32
    %c0_i32_0 = arith.constant 0 : i32
    return %arg0, %c0_i32 : i32, i32
  }
}

</mosaic_0001>

<llo_original>
// kernel: tpu_custom_call.1
$region0: #{tpu_custom_call.1}
  #allocation0 [shape = 'u32[]', space=smem, size = 0x4, offset = 0x4, fixed_abs, tag = 'smem constant byte address 0x4 - core index']
  #allocation1 [shape = 'u32[144,128]{1,0:T(1,128)}', space=vmem, size = 0x12000, scoped, tag = 'internal scratch']
  #allocation2 [shape = 's32[1]{0}', space=sflag, size = 0x4, scoped, tag = 'scoped memory for tpu_custom_call.1']
  #allocation3 [shape = 'u8[512]{0}', space=smem, size = 0x200, scoped, tag = 'prefetched SMEM operand 0']
  %s0 = inlined_call_operand.hbm [shape: f32[9], index: 0, kind: input, shape index: {}]
  %s1 = inlined_call_operand.hbm [shape: f32[1,512], index: 1, kind: input, shape index: {}]
  %s2 = inlined_call_operand.hbm [shape: f32[1,512], index: 2, kind: input, shape index: {}]
  %s3 = inlined_call_operand.vmem [shape: f32[1,512], index: 3, kind: input, shape index: {}]
  %s4 = inlined_call_operand.hbm [shape: f32[1,512], index: 4, kind: input, shape index: {}]
  %s5 = inlined_call_operand.vmem [shape: f32[1,512], index: 5, kind: input, shape index: {}]
  %s6 = inlined_call_operand.hbm [shape: f32[1,512], index: 6, kind: input, shape index: {}]
  %s7 = inlined_call_operand.vmem [shape: f32[1,512], index: 7, kind: input, shape index: {}]
  %s8 = inlined_call_operand.hbm [shape: f32[1,512], index: 8, kind: input, shape index: {}]
  %s9 = inlined_call_operand.vmem [shape: f32[1,512], index: 9, kind: input, shape index: {}]
  %s10 = inlined_call_operand.hbm [shape: f32[1,512], index: 10, kind: output, shape index: {}]
  %s11 = sld [smem:[#allocation0]]
  $region66: #{tpu_custom_call.1} parent=0
    _
  %s13 = ssub.s32 1, %s11
  %s14 = scalar_select 0, %s13, %s11
  %16 = dma.hbm_to_smem %s0, 16, [#allocation3], [#allocation2]
  %17 = dma.done [#allocation2], 16
  %18 = sfence
  $region1: #{tpu_custom_call.1} parent=0
    #allocation4 [shape = 'u8[2048]{0}', space=vmem, size = 0x800, scoped, tag = 'input window, operand 1, single buffered']
    #allocation5 [shape = 's32[1]{0}', space=sflag, size = 0x4, scoped, tag = 'scoped memory for tpu_custom_call.1']
    #allocation6 [shape = 's32[1]{0}', space=sflag, size = 0x4, scoped, tag = 'scoped memory for tpu_custom_call.1']
    #allocation7 [shape = 'u8[2048]{0}', space=vmem, size = 0x800, scoped, tag = 'input window, operand 2, single buffered']
    #allocation8 [shape = 's32[1]{0}', space=sflag, size = 0x4, scoped, tag = 'scoped memory for tpu_custom_call.1']
    #allocation9 [shape = 'u8[2048]{0}', space=vmem, size = 0x800, scoped, tag = 'input window, operand 4, single buffered']
    #allocation10 [shape = 'u8[2048]{0}', space=vmem, size = 0x800, scoped, tag = 'input window, operand 6, single buffered']
    #allocation11 [shape = 's32[1]{0}', space=sflag, size = 0x4, scoped, tag = 'scoped memory for tpu_custom_call.1']
    #allocation12 [shape = 'u8[2048]{0}', space=vmem, size = 0x800, scoped, tag = 'input window, operand 8, single buffered']
    #allocation13 [shape = 'u8[2048]{0}', space=vmem, size = 0x800, scoped, tag = 'output window, operand 0, single buffered']
    %19 = vsyncpa [#allocation5], 0
    %20 = vsyncpa [#allocation8], 0
    %21 = vsyncpa [#allocation11], 0
    %22 = vsyncpa [#allocation6], 0
    // Predicated region
    $region2: #{tpu_custom_call.1} parent=1 // pred_check
      _
    $region3: #{tpu_custom_call.1} parent=1 // pred_check_branch
      %24 = sbr.rel (0) target = $region5
    $region4: #{tpu_custom_call.1} parent=1 // pred_region
      %s26 = ssub.s32 64, 64
      %27 = vsyncadd [#allocation5], %s26
      %s29 = sshll.u32 [#allocation4], 4
      %s30 = int_to_ptr.vmem [resolvable:$true] %s29
      %32 = dma.hbm_to_vmem [thread:$0]  %s1, 64, %s30, [#allocation5]
    $region5: #{tpu_custom_call.1} parent=1 // pred_fallthru
      _
    // Predicated region
    $region6: #{tpu_custom_call.1} parent=1 // pred_check
      _
    $region7: #{tpu_custom_call.1} parent=1 // pred_check_branch
      %34 = sbr.rel (0) target = $region9
    $region8: #{tpu_custom_call.1} parent=1 // pred_region
      %s36 = ssub.s32 64, 64
      %37 = vsyncadd [#allocation8], %s36
      %s39 = sshll.u32 [#allocation7], 4
      %s40 = int_to_ptr.vmem [resolvable:$true] %s39
      %42 = dma.hbm_to_vmem [thread:$0]  %s2, 64, %s40, [#allocation8]
    $region9: #{tpu_custom_call.1} parent=1 // pred_fallthru
      _
    // Predicated region
    $region10: #{tpu_custom_call.1} parent=1 // pred_check
      _
    $region11: #{tpu_custom_call.1} parent=1 // pred_check_branch
      %44 = sbr.rel (0) target = $region13
    $region12: #{tpu_custom_call.1} parent=1 // pred_region
      _
    $region13: #{tpu_custom_call.1} parent=1 // pred_fallthru
      _
    // Predicated region
    $region14: #{tpu_custom_call.1} parent=1 // pred_check
      _
    $region15: #{tpu_custom_call.1} parent=1 // pred_check_branch
      %46 = sbr.rel (0) target = $region17
    $region16: #{tpu_custom_call.1} parent=1 // pred_region
      %s48 = ssub.s32 64, 64
      %49 = vsyncadd [#allocation8], %s48
      %s51 = sshll.u32 [#allocation9], 4
      %s52 = int_to_ptr.vmem [resolvable:$true] %s51
      %54 = dma.hbm_to_vmem [thread:$0]  %s4, 64, %s52, [#allocation8]
    $region17: #{tpu_custom_call.1} parent=1 // pred_fallthru
      _
    // Predicated region
    $region18: #{tpu_custom_call.1} parent=1 // pred_check
      _
    $region19: #{tpu_custom_call.1} parent=1 // pred_check_branch
      %56 = sbr.rel (0) target = $region21
    $region20: #{tpu_custom_call.1} parent=1 // pred_region
      _
    $region21: #{tpu_custom_call.1} parent=1 // pred_fallthru
      _
    // Predicated region
    $region22: #{tpu_custom_call.1} parent=1 // pred_check
      _
    $region23: #{tpu_custom_call.1} parent=1 // pred_check_branch
      %58 = sbr.rel (0) target = $region25
    $region24: #{tpu_custom_call.1} parent=1 // pred_region
      %s60 = ssub.s32 64, 64
      %61 = vsyncadd [#allocation11], %s60
      %s63 = sshll.u32 [#allocation10], 4
      %s64 = int_to_ptr.vmem [resolvable:$true] %s63
      %66 = dma.hbm_to_vmem [thread:$0]  %s6, 64, %s64, [#allocation11]
    $region25: #{tpu_custom_call.1} parent=1 // pred_fallthru
      _
    // Predicated region
    $region26: #{tpu_custom_call.1} parent=1 // pred_check
      _
    $region27: #{tpu_custom_call.1} parent=1 // pred_check_branch
      %68 = sbr.rel (0) target = $region29
    $region28: #{tpu_custom_call.1} parent=1 // pred_region
      _
    $region29: #{tpu_custom_call.1} parent=1 // pred_fallthru
      _
    // Predicated region
    $region30: #{tpu_custom_call.1} parent=1 // pred_check
      _
    $region31: #{tpu_custom_call.1} parent=1 // pred_check_branch
      %70 = sbr.rel (0) target = $region33
    $region32: #{tpu_custom_call.1} parent=1 // pred_region
      %s72 = ssub.s32 64, 64
      %73 = vsyncadd [#allocation11], %s72
      %s75 = sshll.u32 [#allocation12], 4
      %s76 = int_to_ptr.vmem [resolvable:$true] %s75
      %78 = dma.hbm_to_vmem [thread:$0]  %s8, 64, %s76, [#allocation11]
    $region33: #{tpu_custom_call.1} parent=1 // pred_fallthru
      _
    // Predicated region
    $region34: #{tpu_custom_call.1} parent=1 // pred_check
      _
    $region35: #{tpu_custom_call.1} parent=1 // pred_check_branch
      %80 = sbr.rel (0) target = $region37
    $region36: #{tpu_custom_call.1} parent=1 // pred_region
      _
    $region37: #{tpu_custom_call.1} parent=1 // pred_fallthru
      _
    // Predicated region
    $region38: #{tpu_custom_call.1} parent=1 // pred_check
      _
    $region39: #{tpu_custom_call.1} parent=1 // pred_check_branch
      %82 = sbr.rel (0) target = $region41
    $region40: #{tpu_custom_call.1} parent=1 // pred_region
      %83 = dma.done [#allocation5], 64
    $region41: #{tpu_custom_call.1} parent=1 // pred_fallthru
      _
    // Predicated region
    $region42: #{tpu_custom_call.1} parent=1 // pred_check
      _
    $region43: #{tpu_custom_call.1} parent=1 // pred_check_branch
      %85 = sbr.rel (0) target = $region45
    $region44: #{tpu_custom_call.1} parent=1 // pred_region
      %86 = dma.done [#allocation8], 64
    $region45: #{tpu_custom_call.1} parent=1 // pred_fallthru
      _
    // Predicated region
    $region46: #{tpu_custom_call.1} parent=1 // pred_check
      _
    $region47: #{tpu_custom_call.1} parent=1 // pred_check_branch
      %88 = sbr.rel (0) target = $region49
    $region48: #{tpu_custom_call.1} parent=1 // pred_region
      %89 = dma.done [#allocation8], 64
    $region49: #{tpu_custom_call.1} parent=1 // pred_fallthru
      _
    // Predicated region
    $region50: #{tpu_custom_call.1} parent=1 // pred_check
      _
    $region51: #{tpu_custom_call.1} parent=1 // pred_check_branch
      %91 = sbr.rel (0) target = $region53
    $region52: #{tpu_custom_call.1} parent=1 // pred_region
      %92 = dma.done [#allocation11], 64
    $region53: #{tpu_custom_call.1} parent=1 // pred_fallthru
      _
    // Predicated region
    $region54: #{tpu_custom_call.1} parent=1 // pred_check
      _
    $region55: #{tpu_custom_call.1} parent=1 // pred_check_branch
      %94 = sbr.rel (0) target = $region57
    $region56: #{tpu_custom_call.1} parent=1 // pred_region
      %95 = dma.done [#allocation11], 64
    $region57: #{tpu_custom_call.1} parent=1 // pred_fallthru
      _
    %s96 = sld [smem:[#allocation3]]
    %v97 = vld [vmem:[#allocation4] sm:$0xf]
    %v98 = vstv %s96
    %v99 = vmul.f32 %v98, %v97
    %s100 = sld [smem:[#allocation3 + $0x1]]
    %v101 = vld [vmem:[#allocation7] sm:$0xf]
    %v102 = vstv %s100
    %v103 = vmul.f32 %v102, %v101
    %v104 = vadd.f32 %v99, %v103
    %s105 = sld [smem:[#allocation3 + $0x2]]
    %v106 = vld [vmem:[%s3] sm:$0xf]
    %v107 = vstv %s105
    %v108 = vmul.f32 %v107, %v106
    %v109 = vadd.f32 %v104, %v108
    %s110 = sld [smem:[#allocation3 + $0x3]]
    %v111 = vld [vmem:[#allocation9] sm:$0xf]
    %v112 = vstv %s110
    %v113 = vmul.f32 %v112, %v111
    %v114 = vadd.f32 %v109, %v113
    %s115 = sld [smem:[#allocation3 + $0x4]]
    %v116 = vld [vmem:[%s5] sm:$0xf]
    %v117 = vstv %s115
    %v118 = vmul.f32 %v117, %v116
    %v119 = vadd.f32 %v114, %v118
    %s120 = sld [smem:[#allocation3 + $0x5]]
    %v121 = vld [vmem:[#allocation10] sm:$0xf]
    %v122 = vstv %s120
    %v123 = vmul.f32 %v122, %v121
    %v124 = vadd.f32 %v119, %v123
    %s125 = sld [smem:[#allocation3 + $0x6]]
    %v126 = vld [vmem:[%s7] sm:$0xf]
    %v127 = vstv %s125
    %v128 = vmul.f32 %v127, %v126
    %v129 = vadd.f32 %v124, %v128
    %s130 = sld [smem:[#allocation3 + $0x7]]
    %v131 = vld [vmem:[#allocation12] sm:$0xf]
    %v132 = vstv %s130
    %v133 = vmul.f32 %v132, %v131
    %v134 = vadd.f32 %v129, %v133
    %s135 = sld [smem:[#allocation3 + $0x8]]
    %v136 = vld [vmem:[%s9] sm:$0xf]
    %v137 = vstv %s135
    %v138 = vmul.f32 %v137, %v136
    %v139 = vadd.f32 %v134, %v138
    %v140 = vlaneseq
    %vm141 = vcmp.ge.s32.totalorder %v140, 0
    %vm142 = vcmp.lt.s32.totalorder %v140, 512
    %vm143 = vmand %vm141, %vm142
    %144 = vst.msk [vmem:[#allocation13] sm:$0xf] %vm143, %v139
    // Predicated region
    $region58: #{tpu_custom_call.1} parent=1 // pred_check
      _
    $region59: #{tpu_custom_call.1} parent=1 // pred_check_branch
      %146 = sbr.rel (0) target = $region61
    $region60: #{tpu_custom_call.1} parent=1 // pred_region
      %s148 = ssub.s32 64, 64
      %149 = vsyncadd [#allocation6], %s148
      %s151 = sshll.u32 [#allocation13], 4
      %s152 = int_to_ptr.vmem [resolvable:$true] %s151
      %154 = dma.vmem_to_hbm [thread:$0]  %s152, 64, %s10, [#allocation6]
    $region61: #{tpu_custom_call.1} parent=1 // pred_fallthru
      _
    // Predicated region
    $region62: #{tpu_custom_call.1} parent=1 // pred_check
      _
    $region63: #{tpu_custom_call.1} parent=1 // pred_check_branch
      %156 = sbr.rel (0) target = $region65
    $region64: #{tpu_custom_call.1} parent=1 // pred_region
      %157 = dma.done [#allocation6], 64
    $region65: #{tpu_custom_call.1} parent=1 // pred_fallthru
      _
    %158 = vsyncpa [#allocation5], 1
    %159 = vsyncpa [#allocation8], 1
    %160 = vsyncpa [#allocation11], 1
    %161 = vsyncpa [#allocation6], 1

</llo_original>
